<compile_context>
chip_gen: v7x
topology: tpu7x:2x2x1
jax: 0.10.0
libtpu: 0.0.40
codegen_flags: <defaults>
</compile_context>

<pallas_src>
import jax
import jax.numpy as jnp
from jax.experimental import pallas as pl
from jax.experimental.pallas import tpu as pltpu

OUT_PAD = 128  # lane-dense padded output width (true out_features = 2)


def mlp_kernel(x_ref, w1_ref, b1_ref, w2_ref, b2_ref, w3_ref, b3_ref, o_ref):
    """One batch tile: relu(x@W1+b1) -> relu(@W2+b2) -> @W3p+b3p (W3/b3 lane-padded)."""
    x = x_ref[...]

    h1 = jnp.dot(x, w1_ref[...], preferred_element_type=jnp.float32) + b1_ref[...]
    h1 = jnp.maximum(h1, 0.0)

    h2 = jnp.dot(h1, w2_ref[...], preferred_element_type=jnp.float32) + b2_ref[...]
    h2 = jnp.maximum(h2, 0.0)

    h3 = jnp.dot(h2, w3_ref[...], preferred_element_type=jnp.float32) + b3_ref[...]
    o_ref[...] = h3.astype(o_ref.dtype)


def _choose_tile_b(B):
    # Large batches: big tiles to amortize per-step grid overhead (~0.35 us).
    for t in (1024, 512, 256, 128):
        if B >= t:
            return t
    # Tiny batches: round up to a sublane multiple, single grid step.
    return max(8, ((B + 7) // 8) * 8)


def mlp_forward(x, params):
    w1, b1, w2, b2, w3, b3 = params
    B, in_dim = x.shape
    out_dim = w3.shape[1]

    tile_b = _choose_tile_b(B)
    n_tiles = pl.cdiv(B, tile_b)
    B_pad = n_tiles * tile_b

    # Pad batch to a multiple of the tile (zeros flow through harmlessly; sliced off).
    x_p = x if B_pad == B else jnp.pad(x, ((0, B_pad - B), (0, 0)))

    # Zero-pad the final layer to 128 output lanes (wrapper-side, once) so the
    # kernel writes a lane-dense output slab instead of a 2-wide masked store.
    w3_p = jnp.pad(w3, ((0, 0), (0, OUT_PAD - out_dim)))
    b3_p = jnp.pad(b3, ((0, 0), (0, OUT_PAD - out_dim)))

    # Weights/biases: full-array blocks, same block every grid step (VMEM-resident).
    resident = lambda a: pl.BlockSpec(a.shape, lambda i: (0,) * a.ndim)

    out_padded = pl.pallas_call(
        mlp_kernel,
        out_shape=jax.ShapeDtypeStruct((B_pad, OUT_PAD), jnp.float32),
        grid=(n_tiles,),
        in_specs=[
            pl.BlockSpec((tile_b, in_dim), lambda i: (i, 0)),  # x tiled on batch
            resident(w1), resident(b1),
            resident(w2), resident(b2),
            resident(w3_p), resident(b3_p),
        ],
        out_specs=pl.BlockSpec((tile_b, OUT_PAD), lambda i: (i, 0)),
        compiler_params=pltpu.CompilerParams(
            # Batch tiles are independent -> megacore-shard across TCs on v7x.
            dimension_semantics=("parallel",),
        ),
    )(x_p, w1, b1, w2, b2, w3_p, b3_p)

    return out_padded[:B, :out_dim]


def init_params(key):
    """Deterministic init mimicking nn.Linear defaults (uniform +-1/sqrt(fan_in)).
    Weights stored as (in, out), i.e. transpose of PyTorch's (out, in) layout."""
    dims = [(4, 64), (64, 32), (32, 2)]
    params = []
    for fan_in, fan_out in dims:
        kw, kb, key = jax.random.split(key, 3)
        bound = 1.0 / jnp.sqrt(fan_in)
        w = jax.random.uniform(kw, (fan_in, fan_out), jnp.float32, -bound, bound)
        b = jax.random.uniform(kb, (1, fan_out), jnp.float32, -bound, bound)
        params += [w, b]
    return params


def reference_forward(x, params):
    w1, b1, w2, b2, w3, b3 = params
    h = jnp.maximum(x @ w1 + b1, 0.0)
    h = jnp.maximum(h @ w2 + b2, 0.0)
    return h @ w3 + b3


if __name__ == "__main__":
    key = jax.random.PRNGKey(0)
    kx, kx2, kp = jax.random.split(key, 3)

    params = init_params(kp)

    # Small batch (single grid step, sublane-rounded tile).
    B1 = 8
    x1 = jax.random.normal(kx, (B1, 4), jnp.float32)
    out1 = jax.block_until_ready(mlp_forward(x1, params))
    ref1 = reference_forward(x1, params)
    assert out1.shape == (B1, 2), out1.shape
    assert jnp.allclose(out1, ref1, atol=1e-5, rtol=1e-5), "mismatch vs reference (B=8)"

    # Non-multiple-of-tile batch: exercises the multi-step pipelined grid + padding.
    B2 = 300
    x2 = jax.random.normal(kx2, (B2, 4), jnp.float32)
    out2 = jax.block_until_ready(mlp_forward(x2, params))
    ref2 = reference_forward(x2, params)
    assert out2.shape == (B2, 2), out2.shape
    assert jnp.allclose(out2, ref2, atol=1e-5, rtol=1e-5), "mismatch vs reference (B=300)"

    print("KERNEL_OK")
</pallas_src>

<mosaic_0001>
module attributes {stable_mosaic.version = 11 : i64} {
  func.func @mlp_kernel(%arg0: i32, %arg1: memref<8x4xf32, #tpu.memory_space<vmem>>, %arg2: memref<4x64xf32, #tpu.memory_space<vmem>>, %arg3: memref<1x64xf32, #tpu.memory_space<vmem>>, %arg4: memref<64x32xf32, #tpu.memory_space<vmem>>, %arg5: memref<1x32xf32, #tpu.memory_space<vmem>>, %arg6: memref<32x128xf32, #tpu.memory_space<vmem>>, %arg7: memref<1x128xf32, #tpu.memory_space<vmem>>, %arg8: memref<8x128xf32, #tpu.memory_space<vmem>>) attributes {dimension_semantics = [#tpu.dimension_semantics<parallel>], iteration_bounds = array<i64: 1>, scalar_prefetch = 0 : i64, scratch_operands = 0 : i64, tpu.core_type = #tpu.core_type<tc>, window_params = [{transform_indices = @transform_0, window_bounds = array<i64: 8, 4>}, {pipeline_mode = #tpu.pipeline_mode<synchronous>, transform_indices = @transform_1, window_bounds = array<i64: 4, 64>}, {pipeline_mode = #tpu.pipeline_mode<synchronous>, transform_indices = @transform_2, window_bounds = array<i64: 1, 64>}, {pipeline_mode = #tpu.pipeline_mode<synchronous>, transform_indices = @transform_3, window_bounds = array<i64: 64, 32>}, {pipeline_mode = #tpu.pipeline_mode<synchronous>, transform_indices = @transform_4, window_bounds = array<i64: 1, 32>}, {pipeline_mode = #tpu.pipeline_mode<synchronous>, transform_indices = @transform_5, window_bounds = array<i64: 32, 128>}, {pipeline_mode = #tpu.pipeline_mode<synchronous>, transform_indices = @transform_6, window_bounds = array<i64: 1, 128>}, {transform_indices = @transform_7, window_bounds = array<i64: 8, 128>}]} {
    %c0 = arith.constant 0 : index
    %c0_0 = arith.constant 0 : index
    %0 = vector.load %arg1[%c0, %c0_0] : memref<8x4xf32, #tpu.memory_space<vmem>>, vector<8x4xf32>
    %c0_1 = arith.constant 0 : index
    %c0_2 = arith.constant 0 : index
    %1 = vector.load %arg2[%c0_1, %c0_2] : memref<4x64xf32, #tpu.memory_space<vmem>>, vector<4x64xf32>
    %cst = arith.constant dense<0.000000e+00> : vector<8x64xf32>
    %2 = tpu.matmul %0, %1, %cst {dimension_numbers = #tpu.dot_dimension_numbers<[1], [0], [0], [1], [0, 0, 1, 1], [], []>} : vector<8x4xf32>, vector<4x64xf32>, vector<8x64xf32> -> vector<8x64xf32>
    %c0_3 = arith.constant 0 : index
    %c0_4 = arith.constant 0 : index
    %3 = vector.load %arg3[%c0_3, %c0_4] : memref<1x64xf32, #tpu.memory_space<vmem>>, vector<1x64xf32>
    %4 = vector.broadcast %3 : vector<1x64xf32> to vector<8x64xf32>
    %5 = arith.addf %2, %4 : vector<8x64xf32>
    %cst_5 = arith.constant 0.000000e+00 : f32
    %6 = vector.broadcast %cst_5 : f32 to vector<8x64xf32>
    %7 = arith.maximumf %5, %6 : vector<8x64xf32>
    %c0_6 = arith.constant 0 : index
    %c0_7 = arith.constant 0 : index
    %8 = vector.load %arg4[%c0_6, %c0_7] : memref<64x32xf32, #tpu.memory_space<vmem>>, vector<64x32xf32>
    %cst_8 = arith.constant dense<0.000000e+00> : vector<8x32xf32>
    %9 = tpu.matmul %7, %8, %cst_8 {dimension_numbers = #tpu.dot_dimension_numbers<[1], [0], [0], [1], [0, 0, 1, 1], [], []>} : vector<8x64xf32>, vector<64x32xf32>, vector<8x32xf32> -> vector<8x32xf32>
    %c0_9 = arith.constant 0 : index
    %c0_10 = arith.constant 0 : index
    %10 = vector.load %arg5[%c0_9, %c0_10] : memref<1x32xf32, #tpu.memory_space<vmem>>, vector<1x32xf32>
    %11 = vector.broadcast %10 : vector<1x32xf32> to vector<8x32xf32>
    %12 = arith.addf %9, %11 : vector<8x32xf32>
    %cst_11 = arith.constant 0.000000e+00 : f32
    %13 = vector.broadcast %cst_11 : f32 to vector<8x32xf32>
    %14 = arith.maximumf %12, %13 : vector<8x32xf32>
    %c0_12 = arith.constant 0 : index
    %c0_13 = arith.constant 0 : index
    %15 = vector.load %arg6[%c0_12, %c0_13] : memref<32x128xf32, #tpu.memory_space<vmem>>, vector<32x128xf32>
    %cst_14 = arith.constant dense<0.000000e+00> : vector<8x128xf32>
    %16 = tpu.matmul %14, %15, %cst_14 {dimension_numbers = #tpu.dot_dimension_numbers<[1], [0], [0], [1], [0, 0, 1, 1], [], []>} : vector<8x32xf32>, vector<32x128xf32>, vector<8x128xf32> -> vector<8x128xf32>
    %c0_15 = arith.constant 0 : index
    %c0_16 = arith.constant 0 : index
    %17 = vector.load %arg7[%c0_15, %c0_16] : memref<1x128xf32, #tpu.memory_space<vmem>>, vector<1x128xf32>
    %18 = vector.broadcast %17 : vector<1x128xf32> to vector<8x128xf32>
    %19 = arith.addf %16, %18 : vector<8x128xf32>
    %c0_17 = arith.constant 0 : index
    %c0_18 = arith.constant 0 : index
    %20 = vector.load %arg8[%c0_17, %c0_18] : memref<8x128xf32, #tpu.memory_space<vmem>>, vector<8x128xf32>
    tpu.vector_store %arg8[%c0_17, %c0_18], %19 {strides = array<i32>} : memref<8x128xf32, #tpu.memory_space<vmem>>, vector<8x128xf32>,
    return
  }
  func.func @transform_0(%arg0: i32) -> (i32, i32) {
    %c0_i32 = arith.constant 0 : i32
    %c0_i32_0 = arith.constant 0 : i32
    return %arg0, %c0_i32 : i32, i32
  }
  func.func @transform_1(%arg0: i32) -> (i32, i32) {
    %c0_i32 = arith.constant 0 : i32
    %c0_i32_0 = arith.constant 0 : i32
    %c0_i32_1 = arith.constant 0 : i32
    return %c0_i32, %c0_i32_0 : i32, i32
  }
  func.func @transform_2(%arg0: i32) -> (i32, i32) {
    %c0_i32 = arith.constant 0 : i32
    %c0_i32_0 = arith.constant 0 : i32
    %c0_i32_1 = arith.constant 0 : i32
    return %c0_i32, %c0_i32_0 : i32, i32
  }
  func.func @transform_3(%arg0: i32) -> (i32, i32) {
    %c0_i32 = arith.constant 0 : i32
    %c0_i32_0 = arith.constant 0 : i32
    %c0_i32_1 = arith.constant 0 : i32
    return %c0_i32, %c0_i32_0 : i32, i32
  }
  func.func @transform_4(%arg0: i32) -> (i32, i32) {
    %c0_i32 = arith.constant 0 : i32
    %c0_i32_0 = arith.constant 0 : i32
    %c0_i32_1 = arith.constant 0 : i32
    return %c0_i32, %c0_i32_0 : i32, i32
  }
  func.func @transform_5(%arg0: i32) -> (i32, i32) {
    %c0_i32 = arith.constant 0 : i32
    %c0_i32_0 = arith.constant 0 : i32
    %c0_i32_1 = arith.constant 0 : i32
    return %c0_i32, %c0_i32_0 : i32, i32
  }
  func.func @transform_6(%arg0: i32) -> (i32, i32) {
    %c0_i32 = arith.constant 0 : i32
    %c0_i32_0 = arith.constant 0 : i32
    %c0_i32_1 = arith.constant 0 : i32
    return %c0_i32, %c0_i32_0 : i32, i32
  }
  func.func @transform_7(%arg0: i32) -> (i32, i32) {
    %c0_i32 = arith.constant 0 : i32
    %c0_i32_0 = arith.constant 0 : i32
    return %arg0, %c0_i32 : i32, i32
  }
}

</mosaic_0001>

<llo_original>
// kernel: tpu_custom_call.1
$region0: #{tpu_custom_call.1}
  #allocation0 [shape = 'u32[]', space=smem, size = 0x4, offset = 0x4, fixed_abs, tag = 'smem constant byte address 0x4 - core index']
  #allocation1 [shape = 'u32[144,128]{1,0:T(1,128)}', space=vmem, size = 0x12000, scoped, tag = 'internal scratch']
  %s0 = inlined_call_operand.vmem [shape: f32[8,4], index: 0, kind: input, shape index: {}]
  %s1 = inlined_call_operand.vmem [shape: f32[4,64], index: 1, kind: input, shape index: {}]
  %s2 = inlined_call_operand.vmem [shape: f32[1,64], index: 2, kind: input, shape index: {}]
  %s3 = inlined_call_operand.vmem [shape: f32[64,32], index: 3, kind: input, shape index: {}]
  %s4 = inlined_call_operand.vmem [shape: f32[1,32], index: 4, kind: input, shape index: {}]
  %s5 = inlined_call_operand.vmem [shape: f32[32,128], index: 5, kind: input, shape index: {}]
  %s6 = inlined_call_operand.vmem [shape: f32[1,128], index: 6, kind: input, shape index: {}]
  %s7 = inlined_call_operand.hbm [shape: f32[8,128], index: 7, kind: output, shape index: {}]
  %s8 = sld [smem:[#allocation0]]
  $region38: #{tpu_custom_call.1} parent=0
    _
  %s10 = ssub.s32 1, %s8
  %s11 = scalar_select 0, %s10, %s8
  $region1: #{tpu_custom_call.1} parent=0
    #allocation2 [shape = 'u8[4096]{0}', space=vmem, size = 0x1000, scoped, tag = 'output window, operand 0, single buffered']
    #allocation3 [shape = 's32[1]{0}', space=sflag, size = 0x4, scoped, tag = 'scoped memory for tpu_custom_call.1']
    %12 = vsyncpa [#allocation3], 0
    // Predicated region
    $region2: #{tpu_custom_call.1} parent=1 // pred_check
      _
    $region3: #{tpu_custom_call.1} parent=1 // pred_check_branch
      %14 = sbr.rel (0) target = $region5
    $region4: #{tpu_custom_call.1} parent=1 // pred_region
      _
    $region5: #{tpu_custom_call.1} parent=1 // pred_fallthru
      _
    // Predicated region
    $region6: #{tpu_custom_call.1} parent=1 // pred_check
      _
    $region7: #{tpu_custom_call.1} parent=1 // pred_check_branch
      %16 = sbr.rel (0) target = $region9
    $region8: #{tpu_custom_call.1} parent=1 // pred_region
      _
    $region9: #{tpu_custom_call.1} parent=1 // pred_fallthru
      _
    // Predicated region
    $region10: #{tpu_custom_call.1} parent=1 // pred_check
      _
    $region11: #{tpu_custom_call.1} parent=1 // pred_check_branch
      %18 = sbr.rel (0) target = $region13
    $region12: #{tpu_custom_call.1} parent=1 // pred_region
      _
    $region13: #{tpu_custom_call.1} parent=1 // pred_fallthru
      _
    // Predicated region
    $region14: #{tpu_custom_call.1} parent=1 // pred_check
      _
    $region15: #{tpu_custom_call.1} parent=1 // pred_check_branch
      %20 = sbr.rel (0) target = $region17
    $region16: #{tpu_custom_call.1} parent=1 // pred_region
      _
    $region17: #{tpu_custom_call.1} parent=1 // pred_fallthru
      _
    // Predicated region
    $region18: #{tpu_custom_call.1} parent=1 // pred_check
      _
    $region19: #{tpu_custom_call.1} parent=1 // pred_check_branch
      %22 = sbr.rel (0) target = $region21
    $region20: #{tpu_custom_call.1} parent=1 // pred_region
      _
    $region21: #{tpu_custom_call.1} parent=1 // pred_fallthru
      _
    // Predicated region
    $region22: #{tpu_custom_call.1} parent=1 // pred_check
      _
    $region23: #{tpu_custom_call.1} parent=1 // pred_check_branch
      %24 = sbr.rel (0) target = $region25
    $region24: #{tpu_custom_call.1} parent=1 // pred_region
      _
    $region25: #{tpu_custom_call.1} parent=1 // pred_fallthru
      _
    // Predicated region
    $region26: #{tpu_custom_call.1} parent=1 // pred_check
      _
    $region27: #{tpu_custom_call.1} parent=1 // pred_check_branch
      %26 = sbr.rel (0) target = $region29
    $region28: #{tpu_custom_call.1} parent=1 // pred_region
      _
    $region29: #{tpu_custom_call.1} parent=1 // pred_fallthru
      _
    %v27 = vld [vmem:[%s0] sm:$0xff]
    %v28 = vld [vmem:[%s1] sm:$0xf]
    %v29 = vld [vmem:[%s2] sm:$0x1]
    %v31 = vlaneseq
    %v32 = vshrl.u32 %v31, 7
    %v33 = vsub.s32 0, %v32
    %v34 = vrot.slane %v29, %v33
    %vm36 = vcmask 31744
    %v38 = vsel %vm36, %v27, 0
    %vm40 = vcmask 1043456
    %v42 = vsel %vm40, %v28, 0
    %44 = vmatprep.subr.mxu0 0.0
    %45 = vmatpush1.msra.mxu0 %v42
    %46 = vmatprep.subr.mxu0 0.0
    %47 = vmatpush1.msra.mxu0 0.0
    %48 = vmatprep.subr.mxu0 0.0
    %49 = vmatpush1.msra.mxu0 0.0
    %50 = vmatprep.subr.mxu0 0.0
    %51 = vmatpush1.msra.mxu0 0.0
    %52 = vmatprep.subr.mxu0 0.0
    %53 = vmatpush1.msra.mxu0 0.0
    %54 = vmatprep.subr.mxu0 0.0
    %55 = vmatpush1.msra.mxu0 0.0
    %56 = vmatprep.subr.mxu0 0.0
    %57 = vmatpush1.msra.mxu0 0.0
    %58 = vmatprep.subr.mxu0 0.0
    %59 = vmatpush1.msra.mxu0 0.0
    %60 = vmatprep.subr.mxu0 0.0
    %61 = vmatpush1.msra.mxu0 0.0
    %62 = vmatprep.subr.mxu0 0.0
    %63 = vmatpush1.msra.mxu0 0.0
    %64 = vmatprep.subr.mxu0 0.0
    %65 = vmatpush1.msra.mxu0 0.0
    %66 = vmatprep.subr.mxu0 0.0
    %67 = vmatpush1.msra.mxu0 0.0
    %68 = vmatprep.subr.mxu0 0.0
    %69 = vmatpush1.msra.mxu0 0.0
    %70 = vmatprep.subr.mxu0 0.0
    %71 = vmatpush1.msra.mxu0 0.0
    %72 = vmatprep.subr.mxu0 0.0
    %73 = vmatpush1.msra.mxu0 0.0
    %74 = vmatprep.subr.mxu0 0.0
    %75 = vmatpush1.msra.mxu0 0.0
    %76 = vmatprep.subr.mxu0 0.0
    %77 = vmatpush1.msra.mxu0 0.0
    %78 = vmatprep.subr.mxu0 0.0
    %79 = vmatpush1.msra.mxu0 0.0
    %80 = vmatprep.subr.mxu0 0.0
    %81 = vmatpush1.msra.mxu0 0.0
    %82 = vmatprep.subr.mxu0 0.0
    %83 = vmatpush1.msra.mxu0 0.0
    %84 = vmatprep.subr.mxu0 0.0
    %85 = vmatpush1.msra.mxu0 0.0
    %86 = vmatprep.subr.mxu0 0.0
    %87 = vmatpush1.msra.mxu0 0.0
    %88 = vmatprep.subr.mxu0 0.0
    %89 = vmatpush1.msra.mxu0 0.0
    %90 = vmatprep.subr.mxu0 0.0
    %91 = vmatpush1.msra.mxu0 0.0
    %92 = vmatprep.subr.mxu0 0.0
    %93 = vmatpush1.msra.mxu0 0.0
    %94 = vmatprep.subr.mxu0 0.0
    %95 = vmatpush1.msra.mxu0 0.0
    %96 = vmatprep.subr.mxu0 0.0
    %97 = vmatpush1.msra.mxu0 0.0
    %98 = vmatprep.subr.mxu0 0.0
    %99 = vmatpush1.msra.mxu0 0.0
    %100 = vmatprep.subr.mxu0 0.0
    %101 = vmatpush1.msra.mxu0 0.0
    %102 = vmatprep.subr.mxu0 0.0
    %103 = vmatpush1.msra.mxu0 0.0
    %104 = vmatprep.subr.mxu0 0.0
    %105 = vmatpush1.msra.mxu0 0.0
    %106 = vmatprep.subr.mxu0 0.0
    %107 = vmatpush1.msra.mxu0 0.0
    %108 = vmatprep.mubr.f32.mxu0 0.0
    %109 = vmatmul.mubr.f32.gmra.mrb[0].mxu0 %v38
    %v110 = vpop.f32.mrb[0].mxu0
    %v111 = vadd.f32 %v34, %v110
    %v112 = vpop.f32.mrb[0].mxu0
    %113 = vdwg.mxu0
    %v114 = vmax.f32 %v111, 0.0
    %v115 = vld [vmem:[%s3] sm:$0xff]
    %v116 = vld [vmem:[%s3 + $0x8] sm:$0xff]
    %v117 = vld [vmem:[%s3 + $0x10] sm:$0xff]
    %v118 = vld [vmem:[%s3 + $0x18] sm:$0xff]
    %v119 = vld [vmem:[%s3 + $0x20] sm:$0xff]
    %v120 = vld [vmem:[%s3 + $0x28] sm:$0xff]
    %v121 = vld [vmem:[%s3 + $0x30] sm:$0xff]
    %v122 = vld [vmem:[%s3 + $0x38] sm:$0xff]
    %v123 = vld [vmem:[%s4] sm:$0x1]
    %v125 = vlaneseq
    %v126 = vshrl.u32 %v125, 7
    %v127 = vsub.s32 0, %v126
    %v128 = vrot.slane %v123, %v127
    %vm130 = vcmask 523264
    %v132 = vsel %vm130, %v114, 0
    %134 = vmatprep.subr.mxu0 0.0
    %135 = vmatpush1.msra.mxu0 %v115
    %136 = vmatprep.subr.mxu0 0.0
    %137 = vmatpush1.msra.mxu0 %v116
    %138 = vmatprep.subr.mxu0 0.0
    %139 = vmatpush1.msra.mxu0 %v117
    %140 = vmatprep.subr.mxu0 0.0
    %141 = vmatpush1.msra.mxu0 %v118
    %142 = vmatprep.subr.mxu0 0.0
    %143 = vmatpush1.msra.mxu0 %v119
    %144 = vmatprep.subr.mxu0 0.0
    %145 = vmatpush1.msra.mxu0 %v120
    %146 = vmatprep.subr.mxu0 0.0
    %147 = vmatpush1.msra.mxu0 %v121
    %148 = vmatprep.subr.mxu0 0.0
    %149 = vmatpush1.msra.mxu0 %v122
    %150 = vmatprep.subr.mxu0 0.0
    %151 = vmatpush1.msra.mxu0 0.0
    %152 = vmatprep.subr.mxu0 0.0
    %153 = vmatpush1.msra.mxu0 0.0
    %154 = vmatprep.subr.mxu0 0.0
    %155 = vmatpush1.msra.mxu0 0.0
    %156 = vmatprep.subr.mxu0 0.0
    %157 = vmatpush1.msra.mxu0 0.0
    %158 = vmatprep.subr.mxu0 0.0
    %159 = vmatpush1.msra.mxu0 0.0
    %160 = vmatprep.subr.mxu0 0.0
    %161 = vmatpush1.msra.mxu0 0.0
    %162 = vmatprep.subr.mxu0 0.0
    %163 = vmatpush1.msra.mxu0 0.0
    %164 = vmatprep.subr.mxu0 0.0
    %165 = vmatpush1.msra.mxu0 0.0
    %166 = vmatprep.subr.mxu0 0.0
    %167 = vmatpush1.msra.mxu0 0.0
    %168 = vmatprep.subr.mxu0 0.0
    %169 = vmatpush1.msra.mxu0 0.0
    %170 = vmatprep.subr.mxu0 0.0
    %171 = vmatpush1.msra.mxu0 0.0
    %172 = vmatprep.subr.mxu0 0.0
    %173 = vmatpush1.msra.mxu0 0.0
    %174 = vmatprep.subr.mxu0 0.0
    %175 = vmatpush1.msra.mxu0 0.0
    %176 = vmatprep.subr.mxu0 0.0
    %177 = vmatpush1.msra.mxu0 0.0
    %178 = vmatprep.subr.mxu0 0.0
    %179 = vmatpush1.msra.mxu0 0.0
    %180 = vmatprep.subr.mxu0 0.0
    %181 = vmatpush1.msra.mxu0 0.0
    %182 = vmatprep.subr.mxu0 0.0
    %183 = vmatpush1.msra.mxu0 0.0
    %184 = vmatprep.subr.mxu0 0.0
    %185 = vmatpush1.msra.mxu0 0.0
    %186 = vmatprep.subr.mxu0 0.0
    %187 = vmatpush1.msra.mxu0 0.0
    %188 = vmatprep.subr.mxu0 0.0
    %189 = vmatpush1.msra.mxu0 0.0
    %190 = vmatprep.subr.mxu0 0.0
    %191 = vmatpush1.msra.mxu0 0.0
    %192 = vmatprep.subr.mxu0 0.0
    %193 = vmatpush1.msra.mxu0 0.0
    %194 = vmatprep.subr.mxu0 0.0
    %195 = vmatpush1.msra.mxu0 0.0
    %196 = vmatprep.subr.mxu0 0.0
    %197 = vmatpush1.msra.mxu0 0.0
    %198 = vmatprep.mubr.f32.mxu0 0.0
    %199 = vmatmul.mubr.f32.gmra.mrb[0].mxu0 %v132
    %v200 = vpop.f32.mrb[0].mxu0
    %v201 = vadd.f32 %v128, %v200
    %v202 = vpop.f32.mrb[0].mxu0
    %203 = vdwg.mxu0
    %v204 = vmax.f32 %v201, 0.0
    %v205 = vld [vmem:[%s5] sm:$0xff]
    %v206 = vld [vmem:[%s5 + $0x8] sm:$0xff]
    %v207 = vld [vmem:[%s5 + $0x10] sm:$0xff]
    %v208 = vld [vmem:[%s5 + $0x18] sm:$0xff]
    %v209 = vld [vmem:[%s6] sm:$0x1]
    %v211 = vlaneseq
    %v212 = vshrl.u32 %v211, 7
    %v213 = vsub.s32 0, %v212
    %v214 = vrot.slane %v209, %v213
    %vm216 = vcmask 261120
    %v218 = vsel %vm216, %v204, 0
    %220 = vmatprep.subr.mxu0 0.0
    %221 = vmatpush1.msra.mxu0 %v205
    %222 = vmatprep.subr.mxu0 0.0
    %223 = vmatpush1.msra.mxu0 %v206
    %224 = vmatprep.subr.mxu0 0.0
    %225 = vmatpush1.msra.mxu0 %v207
    %226 = vmatprep.subr.mxu0 0.0
    %227 = vmatpush1.msra.mxu0 %v208
    %228 = vmatprep.subr.mxu0 0.0
    %229 = vmatpush1.msra.mxu0 0.0
    %230 = vmatprep.subr.mxu0 0.0
    %231 = vmatpush1.msra.mxu0 0.0
    %232 = vmatprep.subr.mxu0 0.0
    %233 = vmatpush1.msra.mxu0 0.0
    %234 = vmatprep.subr.mxu0 0.0
    %235 = vmatpush1.msra.mxu0 0.0
    %236 = vmatprep.subr.mxu0 0.0
    %237 = vmatpush1.msra.mxu0 0.0
    %238 = vmatprep.subr.mxu0 0.0
    %239 = vmatpush1.msra.mxu0 0.0
    %240 = vmatprep.subr.mxu0 0.0
    %241 = vmatpush1.msra.mxu0 0.0
    %242 = vmatprep.subr.mxu0 0.0
    %243 = vmatpush1.msra.mxu0 0.0
    %244 = vmatprep.subr.mxu0 0.0
    %245 = vmatpush1.msra.mxu0 0.0
    %246 = vmatprep.subr.mxu0 0.0
    %247 = vmatpush1.msra.mxu0 0.0
    %248 = vmatprep.subr.mxu0 0.0
    %249 = vmatpush1.msra.mxu0 0.0
    %250 = vmatprep.subr.mxu0 0.0
    %251 = vmatpush1.msra.mxu0 0.0
    %252 = vmatprep.subr.mxu0 0.0
    %253 = vmatpush1.msra.mxu0 0.0
    %254 = vmatprep.subr.mxu0 0.0
    %255 = vmatpush1.msra.mxu0 0.0
    %256 = vmatprep.subr.mxu0 0.0
    %257 = vmatpush1.msra.mxu0 0.0
    %258 = vmatprep.subr.mxu0 0.0
    %259 = vmatpush1.msra.mxu0 0.0
    %260 = vmatprep.subr.mxu0 0.0
    %261 = vmatpush1.msra.mxu0 0.0
    %262 = vmatprep.subr.mxu0 0.0
    %263 = vmatpush1.msra.mxu0 0.0
    %264 = vmatprep.subr.mxu0 0.0
    %265 = vmatpush1.msra.mxu0 0.0
    %266 = vmatprep.subr.mxu0 0.0
    %267 = vmatpush1.msra.mxu0 0.0
    %268 = vmatprep.subr.mxu0 0.0
    %269 = vmatpush1.msra.mxu0 0.0
    %270 = vmatprep.subr.mxu0 0.0
    %271 = vmatpush1.msra.mxu0 0.0
    %272 = vmatprep.subr.mxu0 0.0
    %273 = vmatpush1.msra.mxu0 0.0
    %274 = vmatprep.subr.mxu0 0.0
    %275 = vmatpush1.msra.mxu0 0.0
    %276 = vmatprep.subr.mxu0 0.0
    %277 = vmatpush1.msra.mxu0 0.0
    %278 = vmatprep.subr.mxu0 0.0
    %279 = vmatpush1.msra.mxu0 0.0
    %280 = vmatprep.subr.mxu0 0.0
    %281 = vmatpush1.msra.mxu0 0.0
    %282 = vmatprep.subr.mxu0 0.0
    %283 = vmatpush1.msra.mxu0 0.0
    %284 = vmatprep.mubr.f32.mxu0 0.0
    %285 = vmatmul.mubr.f32.gmra.mrb[0].mxu0 %v218
    %v286 = vpop.f32.mrb[0].mxu0
    %v287 = vadd.f32 %v214, %v286
    %v288 = vpop.f32.mrb[0].mxu0
    %289 = vdwg.mxu0
    %290 = vst [vmem:[#allocation2] sm:$0xff] %v287
    // Predicated region
    $region30: #{tpu_custom_call.1} parent=1 // pred_check
      _
    $region31: #{tpu_custom_call.1} parent=1 // pred_check_branch
      %292 = sbr.rel (0) target = $region33
    $region32: #{tpu_custom_call.1} parent=1 // pred_region
      %s294 = ssub.s32 128, 128
      %295 = vsyncadd [#allocation3], %s294
      %s297 = sshll.u32 [#allocation2], 4
      %s298 = int_to_ptr.vmem [resolvable:$true] %s297
      %300 = dma.vmem_to_hbm [thread:$0]  %s298, 128, %s7, [#allocation3]
    $region33: #{tpu_custom_call.1} parent=1 // pred_fallthru
      _
    // Predicated region
    $region34: #{tpu_custom_call.1} parent=1 // pred_check
      _
    $region35: #{tpu_custom_call.1} parent=1 // pred_check_branch
      %302 = sbr.rel (0) target = $region37
    $region36: #{tpu_custom_call.1} parent=1 // pred_region
      %303 = dma.done [#allocation3], 128
    $region37: #{tpu_custom_call.1} parent=1 // pred_fallthru
      _
    %304 = vsyncpa [#allocation3], 1

</llo_original>
